<compile_context>
chip_gen: v7x
topology: tpu7x:2x2x1
jax: 0.10.0
libtpu: 0.0.40
codegen_flags: <defaults>
</compile_context>

<pallas_src>
import jax
import jax.numpy as jnp
from jax.experimental import pallas as pl
from jax.experimental.pallas import tpu as pltpu


def cmml3_kernel(x_ref, y_ref, z_ref, w_ref, b_ref,
                 out_x_ref, out_y_ref, out_z_ref, out_f_ref):
    w = w_ref[...]                              # [D, O], input dtype (MXU operand)
    b = b_ref[...].astype(jnp.float32)          # [1, O]

    def softmax_f32(t_f32):
        # exp on the EUP; exact reciprocal only on the tiny [TB, 1] denominator.
        m = jnp.max(t_f32, axis=-1, keepdims=True)
        e = jnp.exp(t_f32 - m)
        inv = pl.reciprocal(jnp.sum(e, axis=-1, keepdims=True), approx=False)
        return e * inv

    def head(t):
        # Shared fc_out: resident RHS, f32 MXU accumulation, bias add.
        return jnp.dot(t, w, preferred_element_type=jnp.float32) + b

    # --- modality 1: x -------------------------------------------------------
    x = x_ref[...]
    out_x_ref[...] = head(x).astype(out_x_ref.dtype)
    xf = x.astype(jnp.float32)
    a = softmax_f32(xf)
    num = a * xf                                # running fused-feature numerator
    s = a                                       # running attention sum

    # --- modality 2: y -------------------------------------------------------
    y = y_ref[...]
    out_y_ref[...] = head(y).astype(out_y_ref.dtype)
    yf = y.astype(jnp.float32)
    a = softmax_f32(yf)
    num = num + a * yf
    s = s + a

    # --- modality 3: z -------------------------------------------------------
    z = z_ref[...]
    out_z_ref[...] = head(z).astype(out_z_ref.dtype)
    zf = z.astype(jnp.float32)
    a = softmax_f32(zf)
    num = num + a * zf
    s = s + a

    # fused = (xa*x + ya*y + za*z) / (xa + ya + za); big reciprocal on the EUP.
    fused = (num * pl.reciprocal(s, approx=True)).astype(x.dtype)
    out_f_ref[...] = head(fused).astype(out_f_ref.dtype)


def _vmem_capacity_bytes():
    try:
        return int(pltpu.get_tpu_info().vmem_capacity_bytes)
    except Exception:
        return 64 * 1024 * 1024   # conservative: v7x per-TensorCore VMEM


def _choose_tile_b(B, D, O, itemsize, budget_bytes):
    """Largest sublane-aligned batch tile that fits the VMEM budget, forcing
    >= 2 grid steps when the batch allows (megacore sharding on v7x)."""
    if B % 8 != 0:
        return B  # block dim must be a multiple of 8 or equal the full dim
    # Per-row footprint: 3 double-buffered input tiles, 4 double-buffered
    # output tiles, ~6 f32 [TB, D]-sized softmax/fusion temporaries.
    per_row = 3 * 2 * D * itemsize + 4 * 2 * O * itemsize + 6 * D * 4
    resident = 2 * (D * O + O) * itemsize      # weight + bias (double-buffered)
    rows = (budget_bytes - resident) // max(per_row, 1)
    rows = max(8, (rows // 8) * 8)
    tile = min(rows, 512, B)
    if B >= 16:
        half = ((B // 2 + 7) // 8) * 8         # ~ceil(B/2), sublane rounded
        tile = min(tile, half)
    return max(8, tile)


def cmml3_forward(x, y, z, w, b):
    """x, y, z: [B, D]; w: [D, O] (transposed nn.Linear weight); b: [O]."""
    B, D = x.shape
    O = w.shape[1]
    b2 = b.reshape(1, O)
    itemsize = jnp.dtype(x.dtype).itemsize

    vmem_cap = _vmem_capacity_bytes()
    tile_budget = min(vmem_cap // 2, 80 * 1024 * 1024)
    vmem_limit = int(min(vmem_cap * 3 // 4, 100 * 1024 * 1024))

    tile_b = _choose_tile_b(B, D, O, itemsize, tile_budget)
    grid = (pl.cdiv(B, tile_b),)

    mod_spec = pl.BlockSpec((tile_b, D), lambda i: (i, 0))
    out_spec = pl.BlockSpec((tile_b, O), lambda i: (i, 0))
    out_sds = jax.ShapeDtypeStruct((B, O), x.dtype)

    return pl.pallas_call(
        cmml3_kernel,
        out_shape=(out_sds, out_sds, out_sds, out_sds),
        grid=grid,
        in_specs=[
            mod_spec,                                   # x
            mod_spec,                                   # y
            mod_spec,                                   # z
            pl.BlockSpec((D, O), lambda i: (0, 0)),     # w  (resident)
            pl.BlockSpec((1, O), lambda i: (0, 0)),     # b  (resident)
        ],
        out_specs=[out_spec, out_spec, out_spec, out_spec],
        compiler_params=pltpu.CompilerParams(
            dimension_semantics=("parallel",),
            vmem_limit_bytes=vmem_limit,
        ),
    )(x, y, z, w, b2)


def cmml3_reference(x, y, z, w, b):
    sm = jax.nn.softmax
    xa, ya, za = sm(x, axis=1), sm(y, axis=1), sm(z, axis=1)
    s = xa + ya + za
    xa, ya, za = xa / s, ya / s, za / s
    fused = xa * x + ya * y + za * z
    lin = lambda t: jnp.dot(t, w, precision="highest") + b
    return lin(x), lin(y), lin(z), lin(fused)


if __name__ == "__main__":
    key = jax.random.PRNGKey(0)
    B, D, O = 8, 32, 16   # batch, input_dim, output_dim (small synthetic shapes)

    kx, ky, kz, kw, kb = jax.random.split(key, 5)
    x = jax.random.normal(kx, (B, D), dtype=jnp.float32)
    y = jax.random.normal(ky, (B, D), dtype=jnp.float32)
    z = jax.random.normal(kz, (B, D), dtype=jnp.float32)
    # fc_out parameters (nn.Linear(input_dim, output_dim)), stored as [D, O]
    w = jax.random.normal(kw, (D, O), dtype=jnp.float32) * (1.0 / jnp.sqrt(D))
    b = jax.random.normal(kb, (O,), dtype=jnp.float32) * 0.01

    outs = cmml3_forward(x, y, z, w, b)
    outs = jax.block_until_ready(outs)

    refs = cmml3_reference(x, y, z, w, b)
    # Tolerance covers MXU f32-emulation precision plus the approx (EUP)
    # reciprocal used for the fused-feature normalization.
    TOL = 5e-2
    for o, r in zip(outs, refs):
        assert o.shape == r.shape, (o.shape, r.shape)
        err = float(jnp.max(jnp.abs(o - r)))
        assert jnp.allclose(o, r, atol=TOL, rtol=TOL), f"max abs err = {err}"

    print("KERNEL_OK")
</pallas_src>

<mosaic_0001>
module attributes {stable_mosaic.version = 11 : i64} {
  func.func @cmml3_kernel(%arg0: i32, %arg1: memref<8x32xf32, #tpu.memory_space<vmem>>, %arg2: memref<8x32xf32, #tpu.memory_space<vmem>>, %arg3: memref<8x32xf32, #tpu.memory_space<vmem>>, %arg4: memref<32x16xf32, #tpu.memory_space<vmem>>, %arg5: memref<1x16xf32, #tpu.memory_space<vmem>>, %arg6: memref<8x16xf32, #tpu.memory_space<vmem>>, %arg7: memref<8x16xf32, #tpu.memory_space<vmem>>, %arg8: memref<8x16xf32, #tpu.memory_space<vmem>>, %arg9: memref<8x16xf32, #tpu.memory_space<vmem>>) attributes {dimension_semantics = [#tpu.dimension_semantics<parallel>], iteration_bounds = array<i64: 1>, scalar_prefetch = 0 : i64, scratch_operands = 0 : i64, tpu.core_type = #tpu.core_type<tc>, window_params = [{transform_indices = @transform_0, window_bounds = array<i64: 8, 32>}, {transform_indices = @transform_1, window_bounds = array<i64: 8, 32>}, {transform_indices = @transform_2, window_bounds = array<i64: 8, 32>}, {pipeline_mode = #tpu.pipeline_mode<synchronous>, transform_indices = @transform_3, window_bounds = array<i64: 32, 16>}, {pipeline_mode = #tpu.pipeline_mode<synchronous>, transform_indices = @transform_4, window_bounds = array<i64: 1, 16>}, {transform_indices = @transform_5, window_bounds = array<i64: 8, 16>}, {transform_indices = @transform_6, window_bounds = array<i64: 8, 16>}, {transform_indices = @transform_7, window_bounds = array<i64: 8, 16>}, {transform_indices = @transform_8, window_bounds = array<i64: 8, 16>}]} {
    %c0 = arith.constant 0 : index
    %c0_0 = arith.constant 0 : index
    %0 = vector.load %arg4[%c0, %c0_0] : memref<32x16xf32, #tpu.memory_space<vmem>>, vector<32x16xf32>
    %c0_1 = arith.constant 0 : index
    %c0_2 = arith.constant 0 : index
    %1 = vector.load %arg5[%c0_1, %c0_2] : memref<1x16xf32, #tpu.memory_space<vmem>>, vector<1x16xf32>
    %c0_3 = arith.constant 0 : index
    %c0_4 = arith.constant 0 : index
    %2 = vector.load %arg1[%c0_3, %c0_4] : memref<8x32xf32, #tpu.memory_space<vmem>>, vector<8x32xf32>
    %cst = arith.constant dense<0.000000e+00> : vector<8x16xf32>
    %3 = tpu.matmul %2, %0, %cst {dimension_numbers = #tpu.dot_dimension_numbers<[1], [0], [0], [1], [0, 0, 1, 1], [], []>} : vector<8x32xf32>, vector<32x16xf32>, vector<8x16xf32> -> vector<8x16xf32>
    %4 = vector.broadcast %1 : vector<1x16xf32> to vector<8x16xf32>
    %5 = arith.addf %3, %4 : vector<8x16xf32>
    %c0_5 = arith.constant 0 : index
    %c0_6 = arith.constant 0 : index
    %6 = vector.load %arg6[%c0_5, %c0_6] : memref<8x16xf32, #tpu.memory_space<vmem>>, vector<8x16xf32>
    tpu.vector_store %arg6[%c0_5, %c0_6], %5 {strides = array<i32>} : memref<8x16xf32, #tpu.memory_space<vmem>>, vector<8x16xf32>,
    %cst_7 = arith.constant dense<0xFF800000> : vector<8xf32>
    %7 = vector.multi_reduction <maximumf>, %2, %cst_7 [1] : vector<8x32xf32> to vector<8xf32>
    %8 = vector.shape_cast %7 : vector<8xf32> to vector<8x1xf32>
    %9 = vector.broadcast %8 : vector<8x1xf32> to vector<8x32xf32>
    %10 = arith.subf %2, %9 : vector<8x32xf32>
    %11 = math.exp %10 : vector<8x32xf32>
    %cst_8 = arith.constant dense<0.000000e+00> : vector<8xf32>
    %12 = vector.multi_reduction <add>, %11, %cst_8 [1] : vector<8x32xf32> to vector<8xf32>
    %13 = vector.shape_cast %12 : vector<8xf32> to vector<8x1xf32>
    %14 = tpu.reciprocal %13 : vector<8x1xf32> -> vector<8x1xf32>
    %15 = vector.broadcast %14 : vector<8x1xf32> to vector<8x32xf32>
    %16 = arith.mulf %11, %15 : vector<8x32xf32>
    %17 = arith.mulf %16, %2 : vector<8x32xf32>
    %c0_9 = arith.constant 0 : index
    %c0_10 = arith.constant 0 : index
    %18 = vector.load %arg2[%c0_9, %c0_10] : memref<8x32xf32, #tpu.memory_space<vmem>>, vector<8x32xf32>
    %cst_11 = arith.constant dense<0.000000e+00> : vector<8x16xf32>
    %19 = tpu.matmul %18, %0, %cst_11 {dimension_numbers = #tpu.dot_dimension_numbers<[1], [0], [0], [1], [0, 0, 1, 1], [], []>} : vector<8x32xf32>, vector<32x16xf32>, vector<8x16xf32> -> vector<8x16xf32>
    %20 = vector.broadcast %1 : vector<1x16xf32> to vector<8x16xf32>
    %21 = arith.addf %19, %20 : vector<8x16xf32>
    %c0_12 = arith.constant 0 : index
    %c0_13 = arith.constant 0 : index
    %22 = vector.load %arg7[%c0_12, %c0_13] : memref<8x16xf32, #tpu.memory_space<vmem>>, vector<8x16xf32>
    tpu.vector_store %arg7[%c0_12, %c0_13], %21 {strides = array<i32>} : memref<8x16xf32, #tpu.memory_space<vmem>>, vector<8x16xf32>,
    %cst_14 = arith.constant dense<0xFF800000> : vector<8xf32>
    %23 = vector.multi_reduction <maximumf>, %18, %cst_14 [1] : vector<8x32xf32> to vector<8xf32>
    %24 = vector.shape_cast %23 : vector<8xf32> to vector<8x1xf32>
    %25 = vector.broadcast %24 : vector<8x1xf32> to vector<8x32xf32>
    %26 = arith.subf %18, %25 : vector<8x32xf32>
    %27 = math.exp %26 : vector<8x32xf32>
    %cst_15 = arith.constant dense<0.000000e+00> : vector<8xf32>
    %28 = vector.multi_reduction <add>, %27, %cst_15 [1] : vector<8x32xf32> to vector<8xf32>
    %29 = vector.shape_cast %28 : vector<8xf32> to vector<8x1xf32>
    %30 = tpu.reciprocal %29 : vector<8x1xf32> -> vector<8x1xf32>
    %31 = vector.broadcast %30 : vector<8x1xf32> to vector<8x32xf32>
    %32 = arith.mulf %27, %31 : vector<8x32xf32>
    %33 = arith.mulf %32, %18 : vector<8x32xf32>
    %34 = arith.addf %17, %33 : vector<8x32xf32>
    %35 = arith.addf %16, %32 : vector<8x32xf32>
    %c0_16 = arith.constant 0 : index
    %c0_17 = arith.constant 0 : index
    %36 = vector.load %arg3[%c0_16, %c0_17] : memref<8x32xf32, #tpu.memory_space<vmem>>, vector<8x32xf32>
    %cst_18 = arith.constant dense<0.000000e+00> : vector<8x16xf32>
    %37 = tpu.matmul %36, %0, %cst_18 {dimension_numbers = #tpu.dot_dimension_numbers<[1], [0], [0], [1], [0, 0, 1, 1], [], []>} : vector<8x32xf32>, vector<32x16xf32>, vector<8x16xf32> -> vector<8x16xf32>
    %38 = vector.broadcast %1 : vector<1x16xf32> to vector<8x16xf32>
    %39 = arith.addf %37, %38 : vector<8x16xf32>
    %c0_19 = arith.constant 0 : index
    %c0_20 = arith.constant 0 : index
    %40 = vector.load %arg8[%c0_19, %c0_20] : memref<8x16xf32, #tpu.memory_space<vmem>>, vector<8x16xf32>
    tpu.vector_store %arg8[%c0_19, %c0_20], %39 {strides = array<i32>} : memref<8x16xf32, #tpu.memory_space<vmem>>, vector<8x16xf32>,
    %cst_21 = arith.constant dense<0xFF800000> : vector<8xf32>
    %41 = vector.multi_reduction <maximumf>, %36, %cst_21 [1] : vector<8x32xf32> to vector<8xf32>
    %42 = vector.shape_cast %41 : vector<8xf32> to vector<8x1xf32>
    %43 = vector.broadcast %42 : vector<8x1xf32> to vector<8x32xf32>
    %44 = arith.subf %36, %43 : vector<8x32xf32>
    %45 = math.exp %44 : vector<8x32xf32>
    %cst_22 = arith.constant dense<0.000000e+00> : vector<8xf32>
    %46 = vector.multi_reduction <add>, %45, %cst_22 [1] : vector<8x32xf32> to vector<8xf32>
    %47 = vector.shape_cast %46 : vector<8xf32> to vector<8x1xf32>
    %48 = tpu.reciprocal %47 : vector<8x1xf32> -> vector<8x1xf32>
    %49 = vector.broadcast %48 : vector<8x1xf32> to vector<8x32xf32>
    %50 = arith.mulf %45, %49 : vector<8x32xf32>
    %51 = arith.mulf %50, %36 : vector<8x32xf32>
    %52 = arith.addf %34, %51 : vector<8x32xf32>
    %53 = arith.addf %35, %50 : vector<8x32xf32>
    %54 = tpu.reciprocal %53 {approx = true} : vector<8x32xf32> -> vector<8x32xf32>
    %55 = arith.mulf %52, %54 : vector<8x32xf32>
    %cst_23 = arith.constant dense<0.000000e+00> : vector<8x16xf32>
    %56 = tpu.matmul %55, %0, %cst_23 {dimension_numbers = #tpu.dot_dimension_numbers<[1], [0], [0], [1], [0, 0, 1, 1], [], []>} : vector<8x32xf32>, vector<32x16xf32>, vector<8x16xf32> -> vector<8x16xf32>
    %57 = vector.broadcast %1 : vector<1x16xf32> to vector<8x16xf32>
    %58 = arith.addf %56, %57 : vector<8x16xf32>
    %c0_24 = arith.constant 0 : index
    %c0_25 = arith.constant 0 : index
    %59 = vector.load %arg9[%c0_24, %c0_25] : memref<8x16xf32, #tpu.memory_space<vmem>>, vector<8x16xf32>
    tpu.vector_store %arg9[%c0_24, %c0_25], %58 {strides = array<i32>} : memref<8x16xf32, #tpu.memory_space<vmem>>, vector<8x16xf32>,
    return
  }
  func.func @transform_0(%arg0: i32) -> (i32, i32) {
    %c0_i32 = arith.constant 0 : i32
    %c0_i32_0 = arith.constant 0 : i32
    return %arg0, %c0_i32 : i32, i32
  }
  func.func @transform_1(%arg0: i32) -> (i32, i32) {
    %c0_i32 = arith.constant 0 : i32
    %c0_i32_0 = arith.constant 0 : i32
    return %arg0, %c0_i32 : i32, i32
  }
  func.func @transform_2(%arg0: i32) -> (i32, i32) {
    %c0_i32 = arith.constant 0 : i32
    %c0_i32_0 = arith.constant 0 : i32
    return %arg0, %c0_i32 : i32, i32
  }
  func.func @transform_3(%arg0: i32) -> (i32, i32) {
    %c0_i32 = arith.constant 0 : i32
    %c0_i32_0 = arith.constant 0 : i32
    %c0_i32_1 = arith.constant 0 : i32
    return %c0_i32, %c0_i32_0 : i32, i32
  }
  func.func @transform_4(%arg0: i32) -> (i32, i32) {
    %c0_i32 = arith.constant 0 : i32
    %c0_i32_0 = arith.constant 0 : i32
    %c0_i32_1 = arith.constant 0 : i32
    return %c0_i32, %c0_i32_0 : i32, i32
  }
  func.func @transform_5(%arg0: i32) -> (i32, i32) {
    %c0_i32 = arith.constant 0 : i32
    %c0_i32_0 = arith.constant 0 : i32
    return %arg0, %c0_i32 : i32, i32
  }
  func.func @transform_6(%arg0: i32) -> (i32, i32) {
    %c0_i32 = arith.constant 0 : i32
    %c0_i32_0 = arith.constant 0 : i32
    return %arg0, %c0_i32 : i32, i32
  }
  func.func @transform_7(%arg0: i32) -> (i32, i32) {
    %c0_i32 = arith.constant 0 : i32
    %c0_i32_0 = arith.constant 0 : i32
    return %arg0, %c0_i32 : i32, i32
  }
  func.func @transform_8(%arg0: i32) -> (i32, i32) {
    %c0_i32 = arith.constant 0 : i32
    %c0_i32_0 = arith.constant 0 : i32
    return %arg0, %c0_i32 : i32, i32
  }
}

</mosaic_0001>

<llo_original>
// kernel: tpu_custom_call.1
$region0: #{tpu_custom_call.1}
  #allocation0 [shape = 'u32[]', space=smem, size = 0x4, offset = 0x4, fixed_abs, tag = 'smem constant byte address 0x4 - core index']
  #allocation1 [shape = 'u32[144,128]{1,0:T(1,128)}', space=vmem, size = 0x12000, scoped, tag = 'internal scratch']
  %s0 = inlined_call_operand.vmem [shape: f32[8,32], index: 0, kind: input, shape index: {}]
  %s1 = inlined_call_operand.vmem [shape: f32[8,32], index: 1, kind: input, shape index: {}]
  %s2 = inlined_call_operand.vmem [shape: f32[8,32], index: 2, kind: input, shape index: {}]
  %s3 = inlined_call_operand.vmem [shape: f32[32,16], index: 3, kind: input, shape index: {}]
  %s4 = inlined_call_operand.vmem [shape: f32[1,16], index: 4, kind: input, shape index: {}]
  %s5 = inlined_call_operand.hbm [shape: f32[8,16], index: 5, kind: output, shape index: {0}]
  %s6 = inlined_call_operand.hbm [shape: f32[8,16], index: 6, kind: output, shape index: {1}]
  %s7 = inlined_call_operand.hbm [shape: f32[8,16], index: 7, kind: output, shape index: {2}]
  %s8 = inlined_call_operand.hbm [shape: f32[8,16], index: 8, kind: output, shape index: {3}]
  %9 = xla_tuple %s5, %s6, %s7, %s8
  %s10 = sld [smem:[#allocation0]]
  $region54: #{tpu_custom_call.1} parent=0
    _
  %s12 = ssub.s32 1, %s10
  %s13 = scalar_select 0, %s12, %s10
  $region1: #{tpu_custom_call.1} parent=0
    #allocation2 [shape = 'u8[4096]{0}', space=vmem, size = 0x1000, scoped, tag = 'output window, operand 0, single buffered']
    #allocation3 [shape = 's32[1]{0}', space=sflag, size = 0x4, scoped, tag = 'scoped memory for tpu_custom_call.1']
    #allocation4 [shape = 'u8[4096]{0}', space=vmem, size = 0x1000, scoped, tag = 'output window, operand 1, single buffered']
    #allocation5 [shape = 's32[1]{0}', space=sflag, size = 0x4, scoped, tag = 'scoped memory for tpu_custom_call.1']
    #allocation6 [shape = 'u8[4096]{0}', space=vmem, size = 0x1000, scoped, tag = 'output window, operand 2, single buffered']
    #allocation7 [shape = 'u8[4096]{0}', space=vmem, size = 0x1000, scoped, tag = 'output window, operand 3, single buffered']
    #allocation8 [shape = 's32[1]{0}', space=sflag, size = 0x4, scoped, tag = 'scoped memory for tpu_custom_call.1']
    %14 = vsyncpa [#allocation3], 0
    %15 = vsyncpa [#allocation5], 0
    %16 = vsyncpa [#allocation8], 0
    // Predicated region
    $region2: #{tpu_custom_call.1} parent=1 // pred_check
      _
    $region3: #{tpu_custom_call.1} parent=1 // pred_check_branch
      %18 = sbr.rel (0) target = $region5
    $region4: #{tpu_custom_call.1} parent=1 // pred_region
      _
    $region5: #{tpu_custom_call.1} parent=1 // pred_fallthru
      _
    // Predicated region
    $region6: #{tpu_custom_call.1} parent=1 // pred_check
      _
    $region7: #{tpu_custom_call.1} parent=1 // pred_check_branch
      %20 = sbr.rel (0) target = $region9
    $region8: #{tpu_custom_call.1} parent=1 // pred_region
      _
    $region9: #{tpu_custom_call.1} parent=1 // pred_fallthru
      _
    // Predicated region
    $region10: #{tpu_custom_call.1} parent=1 // pred_check
      _
    $region11: #{tpu_custom_call.1} parent=1 // pred_check_branch
      %22 = sbr.rel (0) target = $region13
    $region12: #{tpu_custom_call.1} parent=1 // pred_region
      _
    $region13: #{tpu_custom_call.1} parent=1 // pred_fallthru
      _
    // Predicated region
    $region14: #{tpu_custom_call.1} parent=1 // pred_check
      _
    $region15: #{tpu_custom_call.1} parent=1 // pred_check_branch
      %24 = sbr.rel (0) target = $region17
    $region16: #{tpu_custom_call.1} parent=1 // pred_region
      _
    $region17: #{tpu_custom_call.1} parent=1 // pred_fallthru
      _
    // Predicated region
    $region18: #{tpu_custom_call.1} parent=1 // pred_check
      _
    $region19: #{tpu_custom_call.1} parent=1 // pred_check_branch
      %26 = sbr.rel (0) target = $region21
    $region20: #{tpu_custom_call.1} parent=1 // pred_region
      _
    $region21: #{tpu_custom_call.1} parent=1 // pred_fallthru
      _
    %v27 = vld [vmem:[%s3] sm:$0xff]
    %v28 = vld [vmem:[%s3 + $0x8] sm:$0xff]
    %v29 = vld [vmem:[%s3 + $0x10] sm:$0xff]
    %v30 = vld [vmem:[%s3 + $0x18] sm:$0xff]
    %v31 = vld [vmem:[%s4] sm:$0x1]
    %v32 = vld [vmem:[%s0] sm:$0xff]
    %v34 = vlaneseq
    %v35 = vshrl.u32 %v34, 7
    %v36 = vsub.s32 0, %v35
    %v37 = vrot.slane %v31, %v36
    %vm39 = vcmask 261120
    %v41 = vsel %vm39, %v32, 0
    %43 = vmatprep.subr.mxu0 0.0
    %44 = vmatpush1.msra.mxu0 %v27
    %45 = vmatprep.subr.mxu0 0.0
    %46 = vmatpush1.msra.mxu0 %v28
    %47 = vmatprep.subr.mxu0 0.0
    %48 = vmatpush1.msra.mxu0 %v29
    %49 = vmatprep.subr.mxu0 0.0
    %50 = vmatpush1.msra.mxu0 %v30
    %51 = vmatprep.subr.mxu0 0.0
    %52 = vmatpush1.msra.mxu0 0.0
    %53 = vmatprep.subr.mxu0 0.0
    %54 = vmatpush1.msra.mxu0 0.0
    %55 = vmatprep.subr.mxu0 0.0
    %56 = vmatpush1.msra.mxu0 0.0
    %57 = vmatprep.subr.mxu0 0.0
    %58 = vmatpush1.msra.mxu0 0.0
    %59 = vmatprep.subr.mxu0 0.0
    %60 = vmatpush1.msra.mxu0 0.0
    %61 = vmatprep.subr.mxu0 0.0
    %62 = vmatpush1.msra.mxu0 0.0
    %63 = vmatprep.subr.mxu0 0.0
    %64 = vmatpush1.msra.mxu0 0.0
    %65 = vmatprep.subr.mxu0 0.0
    %66 = vmatpush1.msra.mxu0 0.0
    %67 = vmatprep.subr.mxu0 0.0
    %68 = vmatpush1.msra.mxu0 0.0
    %69 = vmatprep.subr.mxu0 0.0
    %70 = vmatpush1.msra.mxu0 0.0
    %71 = vmatprep.subr.mxu0 0.0
    %72 = vmatpush1.msra.mxu0 0.0
    %73 = vmatprep.subr.mxu0 0.0
    %74 = vmatpush1.msra.mxu0 0.0
    %75 = vmatprep.subr.mxu0 0.0
    %76 = vmatpush1.msra.mxu0 0.0
    %77 = vmatprep.subr.mxu0 0.0
    %78 = vmatpush1.msra.mxu0 0.0
    %79 = vmatprep.subr.mxu0 0.0
    %80 = vmatpush1.msra.mxu0 0.0
    %81 = vmatprep.subr.mxu0 0.0
    %82 = vmatpush1.msra.mxu0 0.0
    %83 = vmatprep.subr.mxu0 0.0
    %84 = vmatpush1.msra.mxu0 0.0
    %85 = vmatprep.subr.mxu0 0.0
    %86 = vmatpush1.msra.mxu0 0.0
    %87 = vmatprep.subr.mxu0 0.0
    %88 = vmatpush1.msra.mxu0 0.0
    %89 = vmatprep.subr.mxu0 0.0
    %90 = vmatpush1.msra.mxu0 0.0
    %91 = vmatprep.subr.mxu0 0.0
    %92 = vmatpush1.msra.mxu0 0.0
    %93 = vmatprep.subr.mxu0 0.0
    %94 = vmatpush1.msra.mxu0 0.0
    %95 = vmatprep.subr.mxu0 0.0
    %96 = vmatpush1.msra.mxu0 0.0
    %97 = vmatprep.subr.mxu0 0.0
    %98 = vmatpush1.msra.mxu0 0.0
    %99 = vmatprep.subr.mxu0 0.0
    %100 = vmatpush1.msra.mxu0 0.0
    %101 = vmatprep.subr.mxu0 0.0
    %102 = vmatpush1.msra.mxu0 0.0
    %103 = vmatprep.subr.mxu0 0.0
    %104 = vmatpush1.msra.mxu0 0.0
    %105 = vmatprep.subr.mxu0 0.0
    %106 = vmatpush1.msra.mxu0 0.0
    %107 = vmatprep.mubr.f32.mxu0 0.0
    %108 = vmatmul.mubr.f32.gmra.mrb[0].mxu0 %v41
    %v109 = vpop.f32.mrb[0].mxu0
    %v110 = vadd.f32 %v37, %v109
    %v111 = vpop.f32.mrb[0].mxu0
    %112 = vdwg.mxu0
    %vm113 = vcmask 130048
    %114 = vst.msk [vmem:[#allocation2] sm:$0xff] %vm113, %v110
    %v115 = vsel %vm39, %v32, -inf
    %116 = vmax.xlane.f32.xlu0 %v115
    %v117 = vpop.xlane.xlu0 %116
    %v118 = vsub.f32 %v32, %v117
    %v119 = vmul.f32 %v118, 1.442695
    %v120 = vpow.pop %v119
    %v121 = vsel %vm39, %v120, 0.0
    %122 = vadd.xlane.f32.xlu0 %v121
    %v123 = vpop.xlane.xlu0 %122
    %v124 = vrcp.pop %v123
    %v125 = vmul.f32 %v120, %v124
    %v126 = vmul.f32 %v125, %v32
    %v127 = vld [vmem:[%s1] sm:$0xff]
    %v129 = vsel %vm39, %v127, 0
    %131 = vmatprep.subr.mxu0 0.0
    %132 = vmatpush1.msra.mxu0 %v27
    %133 = vmatprep.subr.mxu0 0.0
    %134 = vmatpush1.msra.mxu0 %v28
    %135 = vmatprep.subr.mxu0 0.0
    %136 = vmatpush1.msra.mxu0 %v29
    %137 = vmatprep.subr.mxu0 0.0
    %138 = vmatpush1.msra.mxu0 %v30
    %139 = vmatprep.subr.mxu0 0.0
    %140 = vmatpush1.msra.mxu0 0.0
    %141 = vmatprep.subr.mxu0 0.0
    %142 = vmatpush1.msra.mxu0 0.0
    %143 = vmatprep.subr.mxu0 0.0
    %144 = vmatpush1.msra.mxu0 0.0
    %145 = vmatprep.subr.mxu0 0.0
    %146 = vmatpush1.msra.mxu0 0.0
    %147 = vmatprep.subr.mxu0 0.0
    %148 = vmatpush1.msra.mxu0 0.0
    %149 = vmatprep.subr.mxu0 0.0
    %150 = vmatpush1.msra.mxu0 0.0
    %151 = vmatprep.subr.mxu0 0.0
    %152 = vmatpush1.msra.mxu0 0.0
    %153 = vmatprep.subr.mxu0 0.0
    %154 = vmatpush1.msra.mxu0 0.0
    %155 = vmatprep.subr.mxu0 0.0
    %156 = vmatpush1.msra.mxu0 0.0
    %157 = vmatprep.subr.mxu0 0.0
    %158 = vmatpush1.msra.mxu0 0.0
    %159 = vmatprep.subr.mxu0 0.0
    %160 = vmatpush1.msra.mxu0 0.0
    %161 = vmatprep.subr.mxu0 0.0
    %162 = vmatpush1.msra.mxu0 0.0
    %163 = vmatprep.subr.mxu0 0.0
    %164 = vmatpush1.msra.mxu0 0.0
    %165 = vmatprep.subr.mxu0 0.0
    %166 = vmatpush1.msra.mxu0 0.0
    %167 = vmatprep.subr.mxu0 0.0
    %168 = vmatpush1.msra.mxu0 0.0
    %169 = vmatprep.subr.mxu0 0.0
    %170 = vmatpush1.msra.mxu0 0.0
    %171 = vmatprep.subr.mxu0 0.0
    %172 = vmatpush1.msra.mxu0 0.0
    %173 = vmatprep.subr.mxu0 0.0
    %174 = vmatpush1.msra.mxu0 0.0
    %175 = vmatprep.subr.mxu0 0.0
    %176 = vmatpush1.msra.mxu0 0.0
    %177 = vmatprep.subr.mxu0 0.0
    %178 = vmatpush1.msra.mxu0 0.0
    %179 = vmatprep.subr.mxu0 0.0
    %180 = vmatpush1.msra.mxu0 0.0
    %181 = vmatprep.subr.mxu0 0.0
    %182 = vmatpush1.msra.mxu0 0.0
    %183 = vmatprep.subr.mxu0 0.0
    %184 = vmatpush1.msra.mxu0 0.0
    %185 = vmatprep.subr.mxu0 0.0
    %186 = vmatpush1.msra.mxu0 0.0
    %187 = vmatprep.subr.mxu0 0.0
    %188 = vmatpush1.msra.mxu0 0.0
    %189 = vmatprep.subr.mxu0 0.0
    %190 = vmatpush1.msra.mxu0 0.0
    %191 = vmatprep.subr.mxu0 0.0
    %192 = vmatpush1.msra.mxu0 0.0
    %193 = vmatprep.subr.mxu0 0.0
    %194 = vmatpush1.msra.mxu0 0.0
    %195 = vmatprep.mubr.f32.mxu0 0.0
    %196 = vmatmul.mubr.f32.gmra.mrb[0].mxu0 %v129
    %v197 = vpop.f32.mrb[0].mxu0
    %v198 = vadd.f32 %v37, %v197
    %v199 = vpop.f32.mrb[0].mxu0
    %200 = vdwg.mxu0
    %201 = vst.msk [vmem:[#allocation4] sm:$0xff] %vm113, %v198
    %v202 = vsel %vm39, %v127, -inf
    %203 = vmax.xlane.f32.xlu0 %v202
    %v204 = vpop.xlane.xlu0 %203
    %v205 = vsub.f32 %v127, %v204
    %v206 = vmul.f32 %v205, 1.442695
    %v207 = vpow.pop %v206
    %v208 = vsel %vm39, %v207, 0.0
    %209 = vadd.xlane.f32.xlu0 %v208
    %v210 = vpop.xlane.xlu0 %209
    %v211 = vrcp.pop %v210
    %v212 = vmul.f32 %v207, %v211
    %v213 = vmul.f32 %v212, %v127
    %v214 = vadd.f32 %v126, %v213
    %v215 = vadd.f32 %v125, %v212
    %v216 = vld [vmem:[%s2] sm:$0xff]
    %v218 = vsel %vm39, %v216, 0
    %220 = vmatprep.subr.mxu0 0.0
    %221 = vmatpush1.msra.mxu0 %v27
    %222 = vmatprep.subr.mxu0 0.0
    %223 = vmatpush1.msra.mxu0 %v28
    %224 = vmatprep.subr.mxu0 0.0
    %225 = vmatpush1.msra.mxu0 %v29
    %226 = vmatprep.subr.mxu0 0.0
    %227 = vmatpush1.msra.mxu0 %v30
    %228 = vmatprep.subr.mxu0 0.0
    %229 = vmatpush1.msra.mxu0 0.0
    %230 = vmatprep.subr.mxu0 0.0
    %231 = vmatpush1.msra.mxu0 0.0
    %232 = vmatprep.subr.mxu0 0.0
    %233 = vmatpush1.msra.mxu0 0.0
    %234 = vmatprep.subr.mxu0 0.0
    %235 = vmatpush1.msra.mxu0 0.0
    %236 = vmatprep.subr.mxu0 0.0
    %237 = vmatpush1.msra.mxu0 0.0
    %238 = vmatprep.subr.mxu0 0.0
    %239 = vmatpush1.msra.mxu0 0.0
    %240 = vmatprep.subr.mxu0 0.0
    %241 = vmatpush1.msra.mxu0 0.0
    %242 = vmatprep.subr.mxu0 0.0
    %243 = vmatpush1.msra.mxu0 0.0
    %244 = vmatprep.subr.mxu0 0.0
    %245 = vmatpush1.msra.mxu0 0.0
    %246 = vmatprep.subr.mxu0 0.0
    %247 = vmatpush1.msra.mxu0 0.0
    %248 = vmatprep.subr.mxu0 0.0
    %249 = vmatpush1.msra.mxu0 0.0
    %250 = vmatprep.subr.mxu0 0.0
    %251 = vmatpush1.msra.mxu0 0.0
    %252 = vmatprep.subr.mxu0 0.0
    %253 = vmatpush1.msra.mxu0 0.0
    %254 = vmatprep.subr.mxu0 0.0
    %255 = vmatpush1.msra.mxu0 0.0
    %256 = vmatprep.subr.mxu0 0.0
    %257 = vmatpush1.msra.mxu0 0.0
    %258 = vmatprep.subr.mxu0 0.0
    %259 = vmatpush1.msra.mxu0 0.0
    %260 = vmatprep.subr.mxu0 0.0
    %261 = vmatpush1.msra.mxu0 0.0
    %262 = vmatprep.subr.mxu0 0.0
    %263 = vmatpush1.msra.mxu0 0.0
    %264 = vmatprep.subr.mxu0 0.0
    %265 = vmatpush1.msra.mxu0 0.0
    %266 = vmatprep.subr.mxu0 0.0
    %267 = vmatpush1.msra.mxu0 0.0
    %268 = vmatprep.subr.mxu0 0.0
    %269 = vmatpush1.msra.mxu0 0.0
    %270 = vmatprep.subr.mxu0 0.0
    %271 = vmatpush1.msra.mxu0 0.0
    %272 = vmatprep.subr.mxu0 0.0
    %273 = vmatpush1.msra.mxu0 0.0
    %274 = vmatprep.subr.mxu0 0.0
    %275 = vmatpush1.msra.mxu0 0.0
    %276 = vmatprep.subr.mxu0 0.0
    %277 = vmatpush1.msra.mxu0 0.0
    %278 = vmatprep.subr.mxu0 0.0
    %279 = vmatpush1.msra.mxu0 0.0
    %280 = vmatprep.subr.mxu0 0.0
    %281 = vmatpush1.msra.mxu0 0.0
    %282 = vmatprep.subr.mxu0 0.0
    %283 = vmatpush1.msra.mxu0 0.0
    %284 = vmatprep.mubr.f32.mxu0 0.0
    %285 = vmatmul.mubr.f32.gmra.mrb[0].mxu0 %v218
    %v286 = vpop.f32.mrb[0].mxu0
    %v287 = vadd.f32 %v37, %v286
    %v288 = vpop.f32.mrb[0].mxu0
    %289 = vdwg.mxu0
    %290 = vst.msk [vmem:[#allocation6] sm:$0xff] %vm113, %v287
    %v291 = vsel %vm39, %v216, -inf
    %292 = vmax.xlane.f32.xlu0 %v291
    %v293 = vpop.xlane.xlu0 %292
    %v294 = vsub.f32 %v216, %v293
    %v295 = vmul.f32 %v294, 1.442695
    %v296 = vpow.pop %v295
    %v297 = vsel %vm39, %v296, 0.0
    %298 = vadd.xlane.f32.xlu0 %v297
    %v299 = vpop.xlane.xlu0 %298
    %v300 = vrcp.pop %v299
    %v301 = vmul.f32 %v296, %v300
    %v302 = vmul.f32 %v301, %v216
    %v303 = vadd.f32 %v214, %v302
    %v304 = vadd.f32 %v215, %v301
    %v305 = vrcp.pop %v304
    %v306 = vmul.f32 %v303, %v305
    %v308 = vsel %vm39, %v306, 0
    %310 = vmatprep.subr.mxu0 0.0
    %311 = vmatpush1.msra.mxu0 %v27
    %312 = vmatprep.subr.mxu0 0.0
    %313 = vmatpush1.msra.mxu0 %v28
    %314 = vmatprep.subr.mxu0 0.0
    %315 = vmatpush1.msra.mxu0 %v29
    %316 = vmatprep.subr.mxu0 0.0
    %317 = vmatpush1.msra.mxu0 %v30
    %318 = vmatprep.subr.mxu0 0.0
    %319 = vmatpush1.msra.mxu0 0.0
    %320 = vmatprep.subr.mxu0 0.0
    %321 = vmatpush1.msra.mxu0 0.0
    %322 = vmatprep.subr.mxu0 0.0
    %323 = vmatpush1.msra.mxu0 0.0
    %324 = vmatprep.subr.mxu0 0.0
    %325 = vmatpush1.msra.mxu0 0.0
    %326 = vmatprep.subr.mxu0 0.0
    %327 = vmatpush1.msra.mxu0 0.0
    %328 = vmatprep.subr.mxu0 0.0
    %329 = vmatpush1.msra.mxu0 0.0
    %330 = vmatprep.subr.mxu0 0.0
    %331 = vmatpush1.msra.mxu0 0.0
    %332 = vmatprep.subr.mxu0 0.0
    %333 = vmatpush1.msra.mxu0 0.0
    %334 = vmatprep.subr.mxu0 0.0
    %335 = vmatpush1.msra.mxu0 0.0
    %336 = vmatprep.subr.mxu0 0.0
    %337 = vmatpush1.msra.mxu0 0.0
    %338 = vmatprep.subr.mxu0 0.0
    %339 = vmatpush1.msra.mxu0 0.0
    %340 = vmatprep.subr.mxu0 0.0
    %341 = vmatpush1.msra.mxu0 0.0
    %342 = vmatprep.subr.mxu0 0.0
    %343 = vmatpush1.msra.mxu0 0.0
    %344 = vmatprep.subr.mxu0 0.0
    %345 = vmatpush1.msra.mxu0 0.0
    %346 = vmatprep.subr.mxu0 0.0
    %347 = vmatpush1.msra.mxu0 0.0
    %348 = vmatprep.subr.mxu0 0.0
    %349 = vmatpush1.msra.mxu0 0.0
    %350 = vmatprep.subr.mxu0 0.0
    %351 = vmatpush1.msra.mxu0 0.0
    %352 = vmatprep.subr.mxu0 0.0
    %353 = vmatpush1.msra.mxu0 0.0
    %354 = vmatprep.subr.mxu0 0.0
    %355 = vmatpush1.msra.mxu0 0.0
    %356 = vmatprep.subr.mxu0 0.0
    %357 = vmatpush1.msra.mxu0 0.0
    %358 = vmatprep.subr.mxu0 0.0
    %359 = vmatpush1.msra.mxu0 0.0
    %360 = vmatprep.subr.mxu0 0.0
    %361 = vmatpush1.msra.mxu0 0.0
    %362 = vmatprep.subr.mxu0 0.0
    %363 = vmatpush1.msra.mxu0 0.0
    %364 = vmatprep.subr.mxu0 0.0
    %365 = vmatpush1.msra.mxu0 0.0
    %366 = vmatprep.subr.mxu0 0.0
    %367 = vmatpush1.msra.mxu0 0.0
    %368 = vmatprep.subr.mxu0 0.0
    %369 = vmatpush1.msra.mxu0 0.0
    %370 = vmatprep.subr.mxu0 0.0
    %371 = vmatpush1.msra.mxu0 0.0
    %372 = vmatprep.subr.mxu0 0.0
    %373 = vmatpush1.msra.mxu0 0.0
    %374 = vmatprep.mubr.f32.mxu0 0.0
    %375 = vmatmul.mubr.f32.gmra.mrb[0].mxu0 %v308
    %v376 = vpop.f32.mrb[0].mxu0
    %v377 = vadd.f32 %v37, %v376
    %v378 = vpop.f32.mrb[0].mxu0
    %379 = vdwg.mxu0
    %380 = vst.msk [vmem:[#allocation7] sm:$0xff] %vm113, %v377
    // Predicated region
    $region22: #{tpu_custom_call.1} parent=1 // pred_check
      _
    $region23: #{tpu_custom_call.1} parent=1 // pred_check_branch
      %382 = sbr.rel (0) target = $region25
    $region24: #{tpu_custom_call.1} parent=1 // pred_region
      %s384 = ssub.s32 128, 128
      %385 = vsyncadd [#allocation3], %s384
      %s387 = sshll.u32 [#allocation2], 4
      %s388 = int_to_ptr.vmem [resolvable:$true] %s387
      %390 = dma.vmem_to_hbm [thread:$0]  %s388, 128, %s5, [#allocation3]
    $region25: #{tpu_custom_call.1} parent=1 // pred_fallthru
      _
    // Predicated region
    $region26: #{tpu_custom_call.1} parent=1 // pred_check
      _
    $region27: #{tpu_custom_call.1} parent=1 // pred_check_branch
      %392 = sbr.rel (0) target = $region29
    $region28: #{tpu_custom_call.1} parent=1 // pred_region
      %s394 = ssub.s32 128, 128
      %395 = vsyncadd [#allocation5], %s394
      %s397 = sshll.u32 [#allocation4], 4
      %s398 = int_to_ptr.vmem [resolvable:$true] %s397
      %400 = dma.vmem_to_hbm [thread:$0]  %s398, 128, %s6, [#allocation5]
    $region29: #{tpu_custom_call.1} parent=1 // pred_fallthru
      _
    // Predicated region
    $region30: #{tpu_custom_call.1} parent=1 // pred_check
      _
    $region31: #{tpu_custom_call.1} parent=1 // pred_check_branch
      %402 = sbr.rel (0) target = $region33
    $region32: #{tpu_custom_call.1} parent=1 // pred_region
      %s404 = ssub.s32 128, 128
      %405 = vsyncadd [#allocation5], %s404
      %s407 = sshll.u32 [#allocation6], 4
      %s408 = int_to_ptr.vmem [resolvable:$true] %s407
      %410 = dma.vmem_to_hbm [thread:$0]  %s408, 128, %s7, [#allocation5]
    $region33: #{tpu_custom_call.1} parent=1 // pred_fallthru
      _
    // Predicated region
    $region34: #{tpu_custom_call.1} parent=1 // pred_check
      _
    $region35: #{tpu_custom_call.1} parent=1 // pred_check_branch
      %412 = sbr.rel (0) target = $region37
    $region36: #{tpu_custom_call.1} parent=1 // pred_region
      %s414 = ssub.s32 128, 128
      %415 = vsyncadd [#allocation8], %s414
      %s417 = sshll.u32 [#allocation7], 4
      %s418 = int_to_ptr.vmem [resolvable:$true] %s417
      %420 = dma.vmem_to_hbm [thread:$0]  %s418, 128, %s8, [#allocation8]
    $region37: #{tpu_custom_call.1} parent=1 // pred_fallthru
      _
    // Predicated region
    $region38: #{tpu_custom_call.1} parent=1 // pred_check
      _
    $region39: #{tpu_custom_call.1} parent=1 // pred_check_branch
      %422 = sbr.rel (0) target = $region41
    $region40: #{tpu_custom_call.1} parent=1 // pred_region
      %423 = dma.done [#allocation3], 128
    $region41: #{tpu_custom_call.1} parent=1 // pred_fallthru
      _
    // Predicated region
    $region42: #{tpu_custom_call.1} parent=1 // pred_check
      _
    $region43: #{tpu_custom_call.1} parent=1 // pred_check_branch
      %425 = sbr.rel (0) target = $region45
    $region44: #{tpu_custom_call.1} parent=1 // pred_region
      %426 = dma.done [#allocation5], 128
    $region45: #{tpu_custom_call.1} parent=1 // pred_fallthru
      _
    // Predicated region
    $region46: #{tpu_custom_call.1} parent=1 // pred_check
      _
    $region47: #{tpu_custom_call.1} parent=1 // pred_check_branch
      %428 = sbr.rel (0) target = $region49
    $region48: #{tpu_custom_call.1} parent=1 // pred_region
      %429 = dma.done [#allocation5], 128
    $region49: #{tpu_custom_call.1} parent=1 // pred_fallthru
      _
    // Predicated region
    $region50: #{tpu_custom_call.1} parent=1 // pred_check
      _
    $region51: #{tpu_custom_call.1} parent=1 // pred_check_branch
      %431 = sbr.rel (0) target = $region53
    $region52: #{tpu_custom_call.1} parent=1 // pred_region
      %432 = dma.done [#allocation8], 128
    $region53: #{tpu_custom_call.1} parent=1 // pred_fallthru
      _
    %433 = vsyncpa [#allocation3], 1
    %434 = vsyncpa [#allocation5], 1
    %435 = vsyncpa [#allocation8], 1

</llo_original>
